<compile_context>
chip_gen: v6e
topology: v6e:2x2x1
jax: 0.10.0
libtpu: 0.0.40
codegen_flags: <defaults>
</compile_context>

<pallas_src>
import functools

import jax
import jax.numpy as jnp
from jax.experimental import pallas as pl
from jax.experimental.pallas import tpu as pltpu

_MIB = 1024 * 1024


# --------------------------------------------------------------------------- helpers

@functools.lru_cache(maxsize=1)
def _vmem_capacity_bytes():
    """Physical VMEM of the local TPU generation (fallback: v7x-sized 64 MiB)."""
    try:
        cap = int(getattr(pltpu.get_tpu_info(), "vmem_capacity_bytes", 0))
        if cap > 0:
            return cap
    except Exception:
        pass
    return 64 * _MIB


def _sublane_multiple(itemsize):
    # f32 packs 8 rows per vreg sublane group, bf16 packs 16, int8/fp8 pack 32.
    return max(8, 32 // int(itemsize))


def _auto_tile(n, per_row_bytes, budget_bytes, mult):
    """Largest sublane-multiple row tile fitting the VMEM budget.  If the whole
    array would fit in a single block, still split into >=2 balanced tiles so
    both of v7x's TensorCores stream HBM (costs nothing on single-TC v5e/v6e)."""
    tile = max(mult, int(budget_bytes) // max(int(per_row_bytes), 1))
    tile -= tile % mult
    if tile < n:
        return tile
    if n <= mult:
        return n                       # single full block (no divisibility issue)
    half = (n + 1) // 2
    return -(-half // mult) * mult     # round up to mult; guaranteed < n when n > mult


def _loss_term(ap, an, margin):
    if margin is None:
        # SoftMarginLoss(an - ap, y=1) = softplus(ap - an), numerically stable form.
        z = ap - an
        return jnp.maximum(z, 0.0) + jnp.log1p(jnp.exp(-jnp.abs(z)))
    return jnp.maximum(ap - an + jnp.float32(margin), 0.0)


# --------------------------------------------------------------------------- kernels

def _triplet_rows_kernel(a_ref, p_ref, n_ref, o_ref, *, margin, n_rows, chunk,
                         needs_mask):
    """Row layout: one sample per row, block (TILE_N, D).  Used for D >= 128
    (or D not dividing 128).  The feature axis is streamed in lane-aligned
    chunks so the in-kernel f32 working set stays ~chunk-sized."""
    tile_n, d = a_ref.shape
    num_chunks = d // chunk

    def diffs(a, p, n):
        if margin is None:
            return a - p, a - n
        eps = jnp.float32(1e-6)  # PyTorch pairwise_distance eps (added before norm)
        return a - p + eps, a - n + eps

    if num_chunks == 1:
        dap, dan = diffs(a_ref[...].astype(jnp.float32),
                         p_ref[...].astype(jnp.float32),
                         n_ref[...].astype(jnp.float32))
        ss_ap = jnp.sum(dap * dap, axis=1, keepdims=True)
        ss_an = jnp.sum(dan * dan, axis=1, keepdims=True)
    else:
        def body(c, carry):
            acc_ap, acc_an = carry
            off = pl.multiple_of(c * chunk, 128)
            a = a_ref[:, pl.ds(off, chunk)].astype(jnp.float32)
            p = p_ref[:, pl.ds(off, chunk)].astype(jnp.float32)
            n = n_ref[:, pl.ds(off, chunk)].astype(jnp.float32)
            dap, dan = diffs(a, p, n)
            return (acc_ap + jnp.sum(dap * dap, axis=1, keepdims=True),
                    acc_an + jnp.sum(dan * dan, axis=1, keepdims=True))

        zeros = jnp.zeros((tile_n, 1), jnp.float32)
        ss_ap, ss_an = jax.lax.fori_loop(0, num_chunks, body, (zeros, zeros),
                                         unroll=num_chunks <= 8)

    term = _loss_term(jnp.sqrt(ss_ap), jnp.sqrt(ss_an), margin)

    if needs_mask:
        # Tail tile: drop padded (out-of-bounds) rows.  Keep this as a select.
        row = (pl.program_id(0) * tile_n
               + jax.lax.broadcasted_iota(jnp.int32, (tile_n, 1), 0))
        term = jnp.where(row < n_rows, term, jnp.float32(0.0))

    o_ref[0, 0] = jnp.sum(term)  # per-tile partial SUM (mean finished outside)


def _triplet_packed_kernel(a_ref, p_ref, n_ref, o_ref, *, margin, n_rows, d, r):
    """Lane-packed layout: r = 128 // d samples per 128-lane row, block
    (TILE_M, 128).  Exact f32 per-segment masked lane reductions (VPU + XLU),
    all vregs and DMA bursts fully lane-dense."""
    tile_m = a_ref.shape[0]
    a = a_ref[...].astype(jnp.float32)          # (tile_m, 128)
    p = p_ref[...].astype(jnp.float32)
    n = n_ref[...].astype(jnp.float32)

    if margin is None:
        dap, dan = a - p, a - n
    else:
        eps = jnp.float32(1e-6)
        dap, dan = a - p + eps, a - n + eps
    d2ap = dap * dap
    d2an = dan * dan

    lane = jax.lax.broadcasted_iota(jnp.int32, (tile_m, 128), 1)
    base = (pl.program_id(0) * tile_m
            + jax.lax.broadcasted_iota(jnp.int32, (tile_m, 1), 0))  # packed-row index

    total = jnp.float32(0.0)
    for j in range(r):                          # r <= 8 segments, static unroll
        seg = (lane >= j * d) & (lane < (j + 1) * d)
        ss_ap = jnp.sum(jnp.where(seg, d2ap, 0.0), axis=1, keepdims=True)
        ss_an = jnp.sum(jnp.where(seg, d2an, 0.0), axis=1, keepdims=True)
        term = _loss_term(jnp.sqrt(ss_ap), jnp.sqrt(ss_an), margin)
        orig = base * r + j                     # original sample row index
        # Mask wrapper-padded rows and grid-tail garbage rows (select, not *).
        term = jnp.where(orig < n_rows, term, jnp.float32(0.0))
        total = total + jnp.sum(term)

    o_ref[0, 0] = total


# --------------------------------------------------------------------------- wrapper

@functools.partial(jax.jit, static_argnums=(3, 4))
def _triplet_loss_impl(anchor, pos, neg, margin, tile_rows):
    n_rows, d = anchor.shape
    itemsize = jnp.dtype(anchor.dtype).itemsize
    mult = _sublane_multiple(itemsize)

    # Generation-aware VMEM budget: 64 MiB limit on 128-MiB chips (v5e/v6e),
    # 32 MiB on v7x (64 MiB physical).  Leave 25% headroom inside the limit.
    vmem_limit = min(_vmem_capacity_bytes() // 2, 64 * _MIB)
    budget = (vmem_limit * 3) // 4

    # Lane-dense packing for small embedding dims that divide 128 (16/32/64).
    use_packed = d < 128 and 128 % d == 0 and (128 // d) <= 8

    if use_packed:
        r = 128 // d
        n_pad = -(-n_rows // r) * r
        if n_pad != n_rows:
            cfg = ((0, n_pad - n_rows), (0, 0))
            anchor = jnp.pad(anchor, cfg)
            pos = jnp.pad(pos, cfg)
            neg = jnp.pad(neg, cfg)
        m_rows = n_pad // r
        inputs = tuple(x.reshape(m_rows, 128) for x in (anchor, pos, neg))

        # 3 inputs x 2 pipeline buffers (input dtype) + ~8 f32 (TILE_M,128) temps.
        per_row = 128 * (6 * itemsize + 8 * 4)
        if tile_rows is None:
            tile = _auto_tile(m_rows, per_row, budget, mult)
        else:
            t = -(-min(int(tile_rows), n_rows) // r)      # sample rows -> packed rows
            t = -(-t // mult) * mult
            tile = m_rows if t >= m_rows else t
        num_tiles = pl.cdiv(m_rows, tile)

        kernel = functools.partial(_triplet_packed_kernel,
                                   margin=margin, n_rows=n_rows, d=d, r=r)
        in_spec = pl.BlockSpec((tile, 128), lambda i: (i, 0))
        elems = m_rows * 128
    else:
        # TODO(synk): D < 128 that does not divide 128 (e.g. 48, 96) still uses the
        # lane-padded row layout; a general packing needs cross-row lane segments.
        chunk = d
        for c in (512, 256, 128):
            if d > c and d % c == 0:
                chunk = c
                break
        # 3 inputs x 2 pipeline buffers + ~7 f32 chunk-sized temporaries.
        per_row = 6 * itemsize * d + 7 * 4 * chunk
        if tile_rows is None:
            tile = _auto_tile(n_rows, per_row, budget, mult)
        else:
            t = min(int(tile_rows), n_rows)
            if t < n_rows:
                t = max(mult, t - t % mult)
            tile = t
        num_tiles = pl.cdiv(n_rows, tile)

        kernel = functools.partial(_triplet_rows_kernel,
                                   margin=margin, n_rows=n_rows, chunk=chunk,
                                   needs_mask=(n_rows % tile) != 0)
        in_spec = pl.BlockSpec((tile, d), lambda i: (i, 0))
        inputs = (anchor, pos, neg)
        elems = n_rows * d

    cost = pl.CostEstimate(
        flops=int(10 * elems),
        transcendentals=int(3 * n_rows),
        bytes_accessed=int(3 * elems * itemsize + num_tiles * 4),
    )

    partials = pl.pallas_call(
        kernel,
        out_shape=jax.ShapeDtypeStruct((num_tiles, 1), jnp.float32),
        grid=(num_tiles,),
        in_specs=[in_spec, in_spec, in_spec],
        # Per-tile partial sums land in SMEM scalars; tiny final reduction below.
        out_specs=pl.BlockSpec((1, 1), lambda i: (i, 0), memory_space=pltpu.SMEM),
        compiler_params=pltpu.CompilerParams(
            dimension_semantics=("parallel",),   # shards tiles across v7x's 2 TCs
            vmem_limit_bytes=vmem_limit,
        ),
        cost_estimate=cost,
    )(*inputs)

    return jnp.sum(partials) / jnp.float32(n_rows)


def triplet_loss(anchor, pos, neg, margin=None, tile_n=None):
    """JAX/Pallas equivalent of TripletLoss.forward. Inputs: (N, D) float arrays.
    `tile_n` optionally overrides the automatic (sample-)rows-per-tile choice."""
    assert anchor.ndim == 2 and anchor.shape == pos.shape == neg.shape
    m = None if margin is None else float(margin)
    t = None if tile_n is None else int(tile_n)
    return _triplet_loss_impl(anchor, pos, neg, m, t)


class TripletLoss:
    """Mirror of the PyTorch module (no parameters to initialize)."""

    def __init__(self, margin=None):
        self.margin = margin

    def __call__(self, anchor, pos, neg):
        return triplet_loss(anchor, pos, neg, margin=self.margin)


# --------------------------------------------------------------------------- checks

def _reference(anchor, pos, neg, margin=None):
    # plain-JAX reference for sanity check
    a = anchor.astype(jnp.float32)
    p = pos.astype(jnp.float32)
    n = neg.astype(jnp.float32)
    if margin is None:
        ap = jnp.linalg.norm(a - p, axis=1)
        an = jnp.linalg.norm(a - n, axis=1)
        return jnp.mean(jnp.log1p(jnp.exp(-(an - ap))))
    eps = 1e-6
    ap = jnp.linalg.norm(a - p + eps, axis=1)
    an = jnp.linalg.norm(a - n + eps, axis=1)
    return jnp.mean(jnp.maximum(ap - an + margin, 0.0))


if __name__ == "__main__":
    key = jax.random.PRNGKey(0)
    k1, k2, k3 = jax.random.split(key, 3)

    def make(n, d, dtype=jnp.float32):
        return (jax.random.normal(k1, (n, d), dtype=dtype),
                jax.random.normal(k2, (n, d), dtype=dtype),
                jax.random.normal(k3, (n, d), dtype=dtype))

    checks = []

    # 1) Small embedding batch, D=32 -> lane-packed path, single full block.
    a, p, n = make(8, 32)
    checks.append((TripletLoss(margin=None)(a, p, n), _reference(a, p, n, None)))
    checks.append((TripletLoss(margin=0.3)(a, p, n), _reference(a, p, n, 0.3)))

    # 2) Packed path with wrapper N-padding (30 samples, 4 samples per lane row).
    a, p, n = make(30, 32)
    checks.append((triplet_loss(a, p, n, margin=0.3), _reference(a, p, n, 0.3)))

    # 3) Packed path, forced multi-tile grid with a ragged tail (200 rows, 64/tile).
    a, p, n = make(200, 32)
    checks.append((triplet_loss(a, p, n, margin=None, tile_n=64),
                   _reference(a, p, n, None)))

    # 4) Row-layout path (D multiple of 128), chunked D-reduction, auto + explicit tiles.
    a, p, n = make(40, 1024)
    checks.append((triplet_loss(a, p, n, margin=None), _reference(a, p, n, None)))
    checks.append((triplet_loss(a, p, n, margin=0.3, tile_n=16),
                   _reference(a, p, n, 0.3)))

    # 5) bf16 inputs (sublane multiple 16), row layout, auto tile.
    a, p, n = make(64, 256, jnp.bfloat16)
    checks.append((triplet_loss(a, p, n, margin=0.3), _reference(a, p, n, 0.3)))

    got = jax.block_until_ready([g for g, _ in checks])
    want = [w for _, w in checks]
    for g, w in zip(got, want):
        assert jnp.allclose(g, w, rtol=1e-4, atol=1e-5), (g, w)

    print("KERNEL_OK")
</pallas_src>

<mosaic_0001>
module attributes {stable_mosaic.version = 11 : i64} {
  func.func @_triplet_packed_kernel(%arg0: i32, %arg1: memref<2x128xf32, #tpu.memory_space<vmem>>, %arg2: memref<2x128xf32, #tpu.memory_space<vmem>>, %arg3: memref<2x128xf32, #tpu.memory_space<vmem>>, %arg4: memref<1x1xf32, #tpu.memory_space<smem>>) attributes {dimension_semantics = [#tpu.dimension_semantics<parallel>], iteration_bounds = array<i64: 1>, scalar_prefetch = 0 : i64, scratch_operands = 0 : i64, tpu.core_type = #tpu.core_type<tc>, window_params = [{transform_indices = @transform_0, window_bounds = array<i64: 2, 128>}, {transform_indices = @transform_1, window_bounds = array<i64: 2, 128>}, {transform_indices = @transform_2, window_bounds = array<i64: 2, 128>}, {transform_indices = @transform_3, window_bounds = array<i64: 1, 1>}]} {
    %c0 = arith.constant 0 : index
    %c0_0 = arith.constant 0 : index
    %0 = vector.load %arg1[%c0, %c0_0] : memref<2x128xf32, #tpu.memory_space<vmem>>, vector<2x128xf32>
    %c0_1 = arith.constant 0 : index
    %c0_2 = arith.constant 0 : index
    %1 = vector.load %arg2[%c0_1, %c0_2] : memref<2x128xf32, #tpu.memory_space<vmem>>, vector<2x128xf32>
    %c0_3 = arith.constant 0 : index
    %c0_4 = arith.constant 0 : index
    %2 = vector.load %arg3[%c0_3, %c0_4] : memref<2x128xf32, #tpu.memory_space<vmem>>, vector<2x128xf32>
    %3 = arith.subf %0, %1 : vector<2x128xf32>
    %4 = arith.subf %0, %2 : vector<2x128xf32>
    %5 = arith.mulf %3, %3 : vector<2x128xf32>
    %6 = arith.mulf %4, %4 : vector<2x128xf32>
    %7 = tpu.iota {dimensions = array<i32: 1>} : vector<2x128xi32>
    %c2_i32 = arith.constant 2 : i32
    %8 = arith.muli %arg0, %c2_i32 : i32
    %9 = tpu.iota {dimensions = array<i32: 0>} : vector<2x1xi32>
    %10 = vector.broadcast %8 : i32 to vector<2x1xi32>
    %11 = arith.addi %10, %9 : vector<2x1xi32>
    %c0_i32 = arith.constant 0 : i32
    %12 = vector.broadcast %c0_i32 : i32 to vector<2x128xi32>
    %13 = arith.cmpi sge, %7, %12 : vector<2x128xi32>
    %c32_i32 = arith.constant 32 : i32
    %14 = vector.broadcast %c32_i32 : i32 to vector<2x128xi32>
    %15 = arith.cmpi slt, %7, %14 : vector<2x128xi32>
    %16 = arith.andi %13, %15 : vector<2x128xi1>
    %cst = arith.constant 0.000000e+00 : f32
    %17 = vector.broadcast %cst : f32 to vector<2x128xf32>
    %18 = arith.select %16, %5, %17 : vector<2x128xi1>, vector<2x128xf32>
    %cst_5 = arith.constant dense<0.000000e+00> : vector<2xf32>
    %19 = vector.multi_reduction <add>, %18, %cst_5 [1] : vector<2x128xf32> to vector<2xf32>
    %20 = vector.shape_cast %19 : vector<2xf32> to vector<2x1xf32>
    %cst_6 = arith.constant 0.000000e+00 : f32
    %21 = vector.broadcast %cst_6 : f32 to vector<2x128xf32>
    %22 = arith.select %16, %6, %21 : vector<2x128xi1>, vector<2x128xf32>
    %cst_7 = arith.constant dense<0.000000e+00> : vector<2xf32>
    %23 = vector.multi_reduction <add>, %22, %cst_7 [1] : vector<2x128xf32> to vector<2xf32>
    %24 = vector.shape_cast %23 : vector<2xf32> to vector<2x1xf32>
    %25 = math.sqrt %20 : vector<2x1xf32>
    %26 = math.sqrt %24 : vector<2x1xf32>
    %27 = arith.subf %25, %26 : vector<2x1xf32>
    %cst_8 = arith.constant 0.000000e+00 : f32
    %28 = vector.broadcast %cst_8 : f32 to vector<2x1xf32>
    %29 = arith.maximumf %27, %28 : vector<2x1xf32>
    %30 = math.absf %27 : vector<2x1xf32>
    %cst_9 = arith.constant 0.000000e+00 : f32
    %31 = vector.broadcast %cst_9 : f32 to vector<2x1xf32>
    %32 = arith.subf %31, %30 : vector<2x1xf32>
    %33 = math.exp %32 : vector<2x1xf32>
    %34 = math.log1p %33 : vector<2x1xf32>
    %35 = arith.addf %29, %34 : vector<2x1xf32>
    %c4_i32 = arith.constant 4 : i32
    %36 = vector.broadcast %c4_i32 : i32 to vector<2x1xi32>
    %37 = arith.muli %11, %36 : vector<2x1xi32>
    %c0_i32_10 = arith.constant 0 : i32
    %38 = vector.broadcast %c0_i32_10 : i32 to vector<2x1xi32>
    %39 = arith.addi %37, %38 : vector<2x1xi32>
    %c8_i32 = arith.constant 8 : i32
    %40 = vector.broadcast %c8_i32 : i32 to vector<2x1xi32>
    %41 = arith.cmpi slt, %39, %40 : vector<2x1xi32>
    %cst_11 = arith.constant 0.000000e+00 : f32
    %42 = vector.broadcast %cst_11 : f32 to vector<2x1xf32>
    %43 = arith.select %41, %35, %42 : vector<2x1xi1>, vector<2x1xf32>
    %44 = vector.shape_cast %43 : vector<2x1xf32> to vector<1x2x1xf32>
    %cst_12 = arith.constant dense<0.000000e+00> : vector<1xf32>
    %45 = vector.multi_reduction <add>, %44, %cst_12 [1, 2] : vector<1x2x1xf32> to vector<1xf32>
    %46 = vector.shape_cast %45 : vector<1xf32> to vector<1x1x1xf32>
    %47 = vector.extract %46[0, 0, 0] : f32 from vector<1x1x1xf32>
    %cst_13 = arith.constant 0.000000e+00 : f32
    %48 = arith.addf %cst_13, %47 : f32
    %c32_i32_14 = arith.constant 32 : i32
    %49 = vector.broadcast %c32_i32_14 : i32 to vector<2x128xi32>
    %50 = arith.cmpi sge, %7, %49 : vector<2x128xi32>
    %c64_i32 = arith.constant 64 : i32
    %51 = vector.broadcast %c64_i32 : i32 to vector<2x128xi32>
    %52 = arith.cmpi slt, %7, %51 : vector<2x128xi32>
    %53 = arith.andi %50, %52 : vector<2x128xi1>
    %cst_15 = arith.constant 0.000000e+00 : f32
    %54 = vector.broadcast %cst_15 : f32 to vector<2x128xf32>
    %55 = arith.select %53, %5, %54 : vector<2x128xi1>, vector<2x128xf32>
    %cst_16 = arith.constant dense<0.000000e+00> : vector<2xf32>
    %56 = vector.multi_reduction <add>, %55, %cst_16 [1] : vector<2x128xf32> to vector<2xf32>
    %57 = vector.shape_cast %56 : vector<2xf32> to vector<2x1xf32>
    %cst_17 = arith.constant 0.000000e+00 : f32
    %58 = vector.broadcast %cst_17 : f32 to vector<2x128xf32>
    %59 = arith.select %53, %6, %58 : vector<2x128xi1>, vector<2x128xf32>
    %cst_18 = arith.constant dense<0.000000e+00> : vector<2xf32>
    %60 = vector.multi_reduction <add>, %59, %cst_18 [1] : vector<2x128xf32> to vector<2xf32>
    %61 = vector.shape_cast %60 : vector<2xf32> to vector<2x1xf32>
    %62 = math.sqrt %57 : vector<2x1xf32>
    %63 = math.sqrt %61 : vector<2x1xf32>
    %64 = arith.subf %62, %63 : vector<2x1xf32>
    %cst_19 = arith.constant 0.000000e+00 : f32
    %65 = vector.broadcast %cst_19 : f32 to vector<2x1xf32>
    %66 = arith.maximumf %64, %65 : vector<2x1xf32>
    %67 = math.absf %64 : vector<2x1xf32>
    %cst_20 = arith.constant 0.000000e+00 : f32
    %68 = vector.broadcast %cst_20 : f32 to vector<2x1xf32>
    %69 = arith.subf %68, %67 : vector<2x1xf32>
    %70 = math.exp %69 : vector<2x1xf32>
    %71 = math.log1p %70 : vector<2x1xf32>
    %72 = arith.addf %66, %71 : vector<2x1xf32>
    %c4_i32_21 = arith.constant 4 : i32
    %73 = vector.broadcast %c4_i32_21 : i32 to vector<2x1xi32>
    %74 = arith.muli %11, %73 : vector<2x1xi32>
    %c1_i32 = arith.constant 1 : i32
    %75 = vector.broadcast %c1_i32 : i32 to vector<2x1xi32>
    %76 = arith.addi %74, %75 : vector<2x1xi32>
    %c8_i32_22 = arith.constant 8 : i32
    %77 = vector.broadcast %c8_i32_22 : i32 to vector<2x1xi32>
    %78 = arith.cmpi slt, %76, %77 : vector<2x1xi32>
    %cst_23 = arith.constant 0.000000e+00 : f32
    %79 = vector.broadcast %cst_23 : f32 to vector<2x1xf32>
    %80 = arith.select %78, %72, %79 : vector<2x1xi1>, vector<2x1xf32>
    %81 = vector.shape_cast %80 : vector<2x1xf32> to vector<1x2x1xf32>
    %cst_24 = arith.constant dense<0.000000e+00> : vector<1xf32>
    %82 = vector.multi_reduction <add>, %81, %cst_24 [1, 2] : vector<1x2x1xf32> to vector<1xf32>
    %83 = vector.shape_cast %82 : vector<1xf32> to vector<1x1x1xf32>
    %84 = vector.extract %83[0, 0, 0] : f32 from vector<1x1x1xf32>
    %85 = arith.addf %48, %84 : f32
    %c64_i32_25 = arith.constant 64 : i32
    %86 = vector.broadcast %c64_i32_25 : i32 to vector<2x128xi32>
    %87 = arith.cmpi sge, %7, %86 : vector<2x128xi32>
    %c96_i32 = arith.constant 96 : i32
    %88 = vector.broadcast %c96_i32 : i32 to vector<2x128xi32>
    %89 = arith.cmpi slt, %7, %88 : vector<2x128xi32>
    %90 = arith.andi %87, %89 : vector<2x128xi1>
    %cst_26 = arith.constant 0.000000e+00 : f32
    %91 = vector.broadcast %cst_26 : f32 to vector<2x128xf32>
    %92 = arith.select %90, %5, %91 : vector<2x128xi1>, vector<2x128xf32>
    %cst_27 = arith.constant dense<0.000000e+00> : vector<2xf32>
    %93 = vector.multi_reduction <add>, %92, %cst_27 [1] : vector<2x128xf32> to vector<2xf32>
    %94 = vector.shape_cast %93 : vector<2xf32> to vector<2x1xf32>
    %cst_28 = arith.constant 0.000000e+00 : f32
    %95 = vector.broadcast %cst_28 : f32 to vector<2x128xf32>
    %96 = arith.select %90, %6, %95 : vector<2x128xi1>, vector<2x128xf32>
    %cst_29 = arith.constant dense<0.000000e+00> : vector<2xf32>
    %97 = vector.multi_reduction <add>, %96, %cst_29 [1] : vector<2x128xf32> to vector<2xf32>
    %98 = vector.shape_cast %97 : vector<2xf32> to vector<2x1xf32>
    %99 = math.sqrt %94 : vector<2x1xf32>
    %100 = math.sqrt %98 : vector<2x1xf32>
    %101 = arith.subf %99, %100 : vector<2x1xf32>
    %cst_30 = arith.constant 0.000000e+00 : f32
    %102 = vector.broadcast %cst_30 : f32 to vector<2x1xf32>
    %103 = arith.maximumf %101, %102 : vector<2x1xf32>
    %104 = math.absf %101 : vector<2x1xf32>
    %cst_31 = arith.constant 0.000000e+00 : f32
    %105 = vector.broadcast %cst_31 : f32 to vector<2x1xf32>
    %106 = arith.subf %105, %104 : vector<2x1xf32>
    %107 = math.exp %106 : vector<2x1xf32>
    %108 = math.log1p %107 : vector<2x1xf32>
    %109 = arith.addf %103, %108 : vector<2x1xf32>
    %c4_i32_32 = arith.constant 4 : i32
    %110 = vector.broadcast %c4_i32_32 : i32 to vector<2x1xi32>
    %111 = arith.muli %11, %110 : vector<2x1xi32>
    %c2_i32_33 = arith.constant 2 : i32
    %112 = vector.broadcast %c2_i32_33 : i32 to vector<2x1xi32>
    %113 = arith.addi %111, %112 : vector<2x1xi32>
    %c8_i32_34 = arith.constant 8 : i32
    %114 = vector.broadcast %c8_i32_34 : i32 to vector<2x1xi32>
    %115 = arith.cmpi slt, %113, %114 : vector<2x1xi32>
    %cst_35 = arith.constant 0.000000e+00 : f32
    %116 = vector.broadcast %cst_35 : f32 to vector<2x1xf32>
    %117 = arith.select %115, %109, %116 : vector<2x1xi1>, vector<2x1xf32>
    %118 = vector.shape_cast %117 : vector<2x1xf32> to vector<1x2x1xf32>
    %cst_36 = arith.constant dense<0.000000e+00> : vector<1xf32>
    %119 = vector.multi_reduction <add>, %118, %cst_36 [1, 2] : vector<1x2x1xf32> to vector<1xf32>
    %120 = vector.shape_cast %119 : vector<1xf32> to vector<1x1x1xf32>
    %121 = vector.extract %120[0, 0, 0] : f32 from vector<1x1x1xf32>
    %122 = arith.addf %85, %121 : f32
    %c96_i32_37 = arith.constant 96 : i32
    %123 = vector.broadcast %c96_i32_37 : i32 to vector<2x128xi32>
    %124 = arith.cmpi sge, %7, %123 : vector<2x128xi32>
    %c128_i32 = arith.constant 128 : i32
    %125 = vector.broadcast %c128_i32 : i32 to vector<2x128xi32>
    %126 = arith.cmpi slt, %7, %125 : vector<2x128xi32>
    %127 = arith.andi %124, %126 : vector<2x128xi1>
    %cst_38 = arith.constant 0.000000e+00 : f32
    %128 = vector.broadcast %cst_38 : f32 to vector<2x128xf32>
    %129 = arith.select %127, %5, %128 : vector<2x128xi1>, vector<2x128xf32>
    %cst_39 = arith.constant dense<0.000000e+00> : vector<2xf32>
    %130 = vector.multi_reduction <add>, %129, %cst_39 [1] : vector<2x128xf32> to vector<2xf32>
    %131 = vector.shape_cast %130 : vector<2xf32> to vector<2x1xf32>
    %cst_40 = arith.constant 0.000000e+00 : f32
    %132 = vector.broadcast %cst_40 : f32 to vector<2x128xf32>
    %133 = arith.select %127, %6, %132 : vector<2x128xi1>, vector<2x128xf32>
    %cst_41 = arith.constant dense<0.000000e+00> : vector<2xf32>
    %134 = vector.multi_reduction <add>, %133, %cst_41 [1] : vector<2x128xf32> to vector<2xf32>
    %135 = vector.shape_cast %134 : vector<2xf32> to vector<2x1xf32>
    %136 = math.sqrt %131 : vector<2x1xf32>
    %137 = math.sqrt %135 : vector<2x1xf32>
    %138 = arith.subf %136, %137 : vector<2x1xf32>
    %cst_42 = arith.constant 0.000000e+00 : f32
    %139 = vector.broadcast %cst_42 : f32 to vector<2x1xf32>
    %140 = arith.maximumf %138, %139 : vector<2x1xf32>
    %141 = math.absf %138 : vector<2x1xf32>
    %cst_43 = arith.constant 0.000000e+00 : f32
    %142 = vector.broadcast %cst_43 : f32 to vector<2x1xf32>
    %143 = arith.subf %142, %141 : vector<2x1xf32>
    %144 = math.exp %143 : vector<2x1xf32>
    %145 = math.log1p %144 : vector<2x1xf32>
    %146 = arith.addf %140, %145 : vector<2x1xf32>
    %c4_i32_44 = arith.constant 4 : i32
    %147 = vector.broadcast %c4_i32_44 : i32 to vector<2x1xi32>
    %148 = arith.muli %11, %147 : vector<2x1xi32>
    %c3_i32 = arith.constant 3 : i32
    %149 = vector.broadcast %c3_i32 : i32 to vector<2x1xi32>
    %150 = arith.addi %148, %149 : vector<2x1xi32>
    %c8_i32_45 = arith.constant 8 : i32
    %151 = vector.broadcast %c8_i32_45 : i32 to vector<2x1xi32>
    %152 = arith.cmpi slt, %150, %151 : vector<2x1xi32>
    %cst_46 = arith.constant 0.000000e+00 : f32
    %153 = vector.broadcast %cst_46 : f32 to vector<2x1xf32>
    %154 = arith.select %152, %146, %153 : vector<2x1xi1>, vector<2x1xf32>
    %155 = vector.shape_cast %154 : vector<2x1xf32> to vector<1x2x1xf32>
    %cst_47 = arith.constant dense<0.000000e+00> : vector<1xf32>
    %156 = vector.multi_reduction <add>, %155, %cst_47 [1, 2] : vector<1x2x1xf32> to vector<1xf32>
    %157 = vector.shape_cast %156 : vector<1xf32> to vector<1x1x1xf32>
    %158 = vector.extract %157[0, 0, 0] : f32 from vector<1x1x1xf32>
    %159 = arith.addf %122, %158 : f32
    %c0_48 = arith.constant 0 : index
    %c0_49 = arith.constant 0 : index
    %160 = memref.load %arg4[%c0_48, %c0_49] : memref<1x1xf32, #tpu.memory_space<smem>>
    memref.store %159, %arg4[%c0_48, %c0_49] : memref<1x1xf32, #tpu.memory_space<smem>>
    return
  }
  func.func @transform_0(%arg0: i32) -> (i32, i32) {
    %c0_i32 = arith.constant 0 : i32
    %c0_i32_0 = arith.constant 0 : i32
    return %arg0, %c0_i32 : i32, i32
  }
  func.func @transform_1(%arg0: i32) -> (i32, i32) {
    %c0_i32 = arith.constant 0 : i32
    %c0_i32_0 = arith.constant 0 : i32
    return %arg0, %c0_i32 : i32, i32
  }
  func.func @transform_2(%arg0: i32) -> (i32, i32) {
    %c0_i32 = arith.constant 0 : i32
    %c0_i32_0 = arith.constant 0 : i32
    return %arg0, %c0_i32 : i32, i32
  }
  func.func @transform_3(%arg0: i32) -> (i32, i32) {
    %c0_i32 = arith.constant 0 : i32
    %c0_i32_0 = arith.constant 0 : i32
    return %arg0, %c0_i32 : i32, i32
  }
}

</mosaic_0001>

<llo_original>
// kernel: _triplet_loss_impl.1
$region0: #{_triplet_loss_impl.1}
  #allocation0 [shape = 'u32[]', space=smem, size = 0x4, offset = 0x4, fixed_abs, tag = 'smem constant byte address 0x4 - core index']
  #allocation1 [shape = 'u32[144,128]{1,0:T(1,128)}', space=vmem, size = 0x12000, scoped, tag = 'internal scratch']
  %s0 = inlined_call_operand.vmem [shape: f32[2,128], index: 0, kind: input, shape index: {}]
  %s1 = inlined_call_operand.vmem [shape: f32[2,128], index: 1, kind: input, shape index: {}]
  %s2 = inlined_call_operand.vmem [shape: f32[2,128], index: 2, kind: input, shape index: {}]
  %s3 = inlined_call_operand.hbm [shape: f32[1,1], index: 3, kind: output, shape index: {}]
  %s4 = sld [smem:[#allocation0]]
  $region22: #{_triplet_loss_impl.1} parent=0
    _
  %s6 = ssub.s32 1, %s4
  %s7 = scalar_select 0, %s6, %s4
  $region1: #{_triplet_loss_impl.1} parent=0
    #allocation2 [shape = 'u8[512]{0}', space=smem, size = 0x200, scoped, tag = 'output window, operand 0, single buffered']
    #allocation3 [shape = 's32[1]{0}', space=sflag, size = 0x4, scoped, tag = 'scoped memory for _triplet_loss_impl.1']
    %8 = vsyncpa [#allocation3], 0
    // Predicated region
    $region2: #{_triplet_loss_impl.1} parent=1 // pred_check
      _
    $region3: #{_triplet_loss_impl.1} parent=1 // pred_check_branch
      %10 = sbr.rel (0) target = $region5
    $region4: #{_triplet_loss_impl.1} parent=1 // pred_region
      _
    $region5: #{_triplet_loss_impl.1} parent=1 // pred_fallthru
      _
    // Predicated region
    $region6: #{_triplet_loss_impl.1} parent=1 // pred_check
      _
    $region7: #{_triplet_loss_impl.1} parent=1 // pred_check_branch
      %12 = sbr.rel (0) target = $region9
    $region8: #{_triplet_loss_impl.1} parent=1 // pred_region
      _
    $region9: #{_triplet_loss_impl.1} parent=1 // pred_fallthru
      _
    // Predicated region
    $region10: #{_triplet_loss_impl.1} parent=1 // pred_check
      _
    $region11: #{_triplet_loss_impl.1} parent=1 // pred_check_branch
      %14 = sbr.rel (0) target = $region13
    $region12: #{_triplet_loss_impl.1} parent=1 // pred_region
      _
    $region13: #{_triplet_loss_impl.1} parent=1 // pred_fallthru
      _
    %v15 = vld [vmem:[%s0] sm:$0x3]
    %v16 = vld [vmem:[%s1] sm:$0x3]
    %v17 = vld [vmem:[%s2] sm:$0x3]
    %v18 = vsub.f32 %v15, %v16
    %v19 = vsub.f32 %v15, %v17
    %v20 = vmul.f32 %v18, %v18
    %v21 = vmul.f32 %v19, %v19
    %v22 = vlaneseq
    %v23 = vand.u32 %v22, 127
    %s24 = smul.u32 0, 2
    %v25 = vlaneseq
    %v26 = vshrl.u32 %v25, 7
    %v27 = vstv %s24
    %v28 = vadd.s32 %v27, %v26
    %vm29 = vcmp.ge.s32.totalorder %v23, 0
    %vm30 = vcmp.lt.s32.totalorder %v23, 32
    %vm31 = vmand %vm29, %vm30
    %v32 = vsel %vm31, %v20, 0.0
    %vm33 = vcmask 1041408
    %v34 = vsel %vm33, %v32, 0.0
    %35 = vadd.xlane.f32.xlu0 %v34
    %v36 = vpop.xlane.xlu0 %35
    %v37 = vsel %vm31, %v21, 0.0
    %v38 = vsel %vm33, %v37, 0.0
    %39 = vadd.xlane.f32.xlu0 %v38
    %v40 = vpop.xlane.xlu0 %39
    %v41 = vrsqrt.pop %v36
    %v42 = vmul.f32 %v36, %v41
    %vm43 = vcmp.eq.f32.partialorder %v36, inf
    %v44 = vsel %vm43, %v36, %v42
    %vm45 = vcmp.eq.f32.partialorder %v36, 0.0
    %v46 = vand.u32 %v36, 2147483648
    %v47 = vsel %vm45, %v46, %v44
    %v48 = vrsqrt.pop %v40
    %v49 = vmul.f32 %v40, %v48
    %vm50 = vcmp.eq.f32.partialorder %v40, inf
    %v51 = vsel %vm50, %v40, %v49
    %vm52 = vcmp.eq.f32.partialorder %v40, 0.0
    %v53 = vand.u32 %v40, 2147483648
    %v54 = vsel %vm52, %v53, %v51
    %v55 = vsub.f32 %v47, %v54
    %v56 = vmax.f32 %v55, 0.0
    %v57 = vand.u32 2147483647, %v55
    %v58 = vsub.f32 0.0, %v57
    %v59 = vmul.f32 %v58, 1.442695
    %v60 = vpow.pop %v59
    %v61 = vadd.f32 %v60, 1.0
    %v62 = vlog2.pop %v61
    %v63 = vmul.f32 %v62, 0.6931472
    %v64 = vmul.f32 -0.5, %v60
    %v65 = vadd.f32 %v64, 1.0
    %v66 = vmul.f32 %v65, %v60
    %v67 = vand.u32 2147483647, %v60
    %vm68 = vcmp.lt.f32.partialorder %v67, 0.0004427343
    %v69 = vsel %vm68, %v66, %v63
    %v70 = vadd.f32 %v56, %v69
    %v71 = vmul.u32 %v28, 4
    %vm72 = vcmp.lt.s32.totalorder %v71, 8
    %v73 = vsel %vm72, %v70, 0.0
    %vm74 = vcmask 1024
    %v75 = vsel %vm74, %v73, 0.0
    %76 = vadd.xlane.f32.xlu0 %v75
    %v77 = vpop.xlane.xlu0 %76
    %v78 = vrot.slane %v77, 4
    %v79 = vadd.f32 %v77, %v78
    %v80 = vrot.slane %v79, 2
    %v81 = vadd.f32 %v79, %v80
    %v82 = vrot.slane %v81, 1
    %v83 = vadd.f32 %v81, %v82
    %s84 = vtos %v83
    %s85 = sadd.f32 %s84, 0.0
    %vm86 = vcmp.ge.s32.totalorder %v23, 32
    %vm87 = vcmp.lt.s32.totalorder %v23, 64
    %vm88 = vmand %vm86, %vm87
    %v89 = vsel %vm88, %v20, 0.0
    %v90 = vsel %vm33, %v89, 0.0
    %91 = vadd.xlane.f32.xlu0 %v90
    %v92 = vpop.xlane.xlu0 %91
    %v93 = vsel %vm88, %v21, 0.0
    %v94 = vsel %vm33, %v93, 0.0
    %95 = vadd.xlane.f32.xlu0 %v94
    %v96 = vpop.xlane.xlu0 %95
    %v97 = vrsqrt.pop %v92
    %v98 = vmul.f32 %v92, %v97
    %vm99 = vcmp.eq.f32.partialorder %v92, inf
    %v100 = vsel %vm99, %v92, %v98
    %vm101 = vcmp.eq.f32.partialorder %v92, 0.0
    %v102 = vand.u32 %v92, 2147483648
    %v103 = vsel %vm101, %v102, %v100
    %v104 = vrsqrt.pop %v96
    %v105 = vmul.f32 %v96, %v104
    %vm106 = vcmp.eq.f32.partialorder %v96, inf
    %v107 = vsel %vm106, %v96, %v105
    %vm108 = vcmp.eq.f32.partialorder %v96, 0.0
    %v109 = vand.u32 %v96, 2147483648
    %v110 = vsel %vm108, %v109, %v107
    %v111 = vsub.f32 %v103, %v110
    %v112 = vmax.f32 %v111, 0.0
    %v113 = vand.u32 2147483647, %v111
    %v114 = vsub.f32 0.0, %v113
    %v115 = vmul.f32 %v114, 1.442695
    %v116 = vpow.pop %v115
    %v117 = vadd.f32 %v116, 1.0
    %v118 = vlog2.pop %v117
    %v119 = vmul.f32 %v118, 0.6931472
    %v120 = vmul.f32 -0.5, %v116
    %v121 = vadd.f32 %v120, 1.0
    %v122 = vmul.f32 %v121, %v116
    %v123 = vand.u32 2147483647, %v116
    %vm124 = vcmp.lt.f32.partialorder %v123, 0.0004427343
    %v125 = vsel %vm124, %v122, %v119
    %v126 = vadd.f32 %v112, %v125
    %v127 = vadd.s32 %v71, 1
    %vm128 = vcmp.lt.s32.totalorder %v127, 8
    %v129 = vsel %vm128, %v126, 0.0
    %v130 = vsel %vm74, %v129, 0.0
    %131 = vadd.xlane.f32.xlu0 %v130
    %v132 = vpop.xlane.xlu0 %131
    %v133 = vrot.slane %v132, 4
    %v134 = vadd.f32 %v132, %v133
    %v135 = vrot.slane %v134, 2
    %v136 = vadd.f32 %v134, %v135
    %v137 = vrot.slane %v136, 1
    %v138 = vadd.f32 %v136, %v137
    %s139 = vtos %v138
    %s140 = sadd.f32 %s85, %s139
    %vm141 = vcmp.ge.s32.totalorder %v23, 64
    %vm142 = vcmp.lt.s32.totalorder %v23, 96
    %vm143 = vmand %vm141, %vm142
    %v144 = vsel %vm143, %v20, 0.0
    %v145 = vsel %vm33, %v144, 0.0
    %146 = vadd.xlane.f32.xlu0 %v145
    %v147 = vpop.xlane.xlu0 %146
    %v148 = vsel %vm143, %v21, 0.0
    %v149 = vsel %vm33, %v148, 0.0
    %150 = vadd.xlane.f32.xlu0 %v149
    %v151 = vpop.xlane.xlu0 %150
    %v152 = vrsqrt.pop %v147
    %v153 = vmul.f32 %v147, %v152
    %vm154 = vcmp.eq.f32.partialorder %v147, inf
    %v155 = vsel %vm154, %v147, %v153
    %vm156 = vcmp.eq.f32.partialorder %v147, 0.0
    %v157 = vand.u32 %v147, 2147483648
    %v158 = vsel %vm156, %v157, %v155
    %v159 = vrsqrt.pop %v151
    %v160 = vmul.f32 %v151, %v159
    %vm161 = vcmp.eq.f32.partialorder %v151, inf
    %v162 = vsel %vm161, %v151, %v160
    %vm163 = vcmp.eq.f32.partialorder %v151, 0.0
    %v164 = vand.u32 %v151, 2147483648
    %v165 = vsel %vm163, %v164, %v162
    %v166 = vsub.f32 %v158, %v165
    %v167 = vmax.f32 %v166, 0.0
    %v168 = vand.u32 2147483647, %v166
    %v169 = vsub.f32 0.0, %v168
    %v170 = vmul.f32 %v169, 1.442695
    %v171 = vpow.pop %v170
    %v172 = vadd.f32 %v171, 1.0
    %v173 = vlog2.pop %v172
    %v174 = vmul.f32 %v173, 0.6931472
    %v175 = vmul.f32 -0.5, %v171
    %v176 = vadd.f32 %v175, 1.0
    %v177 = vmul.f32 %v176, %v171
    %v178 = vand.u32 2147483647, %v171
    %vm179 = vcmp.lt.f32.partialorder %v178, 0.0004427343
    %v180 = vsel %vm179, %v177, %v174
    %v181 = vadd.f32 %v167, %v180
    %v182 = vadd.s32 %v71, 2
    %vm183 = vcmp.lt.s32.totalorder %v182, 8
    %v184 = vsel %vm183, %v181, 0.0
    %v185 = vsel %vm74, %v184, 0.0
    %186 = vadd.xlane.f32.xlu0 %v185
    %v187 = vpop.xlane.xlu0 %186
    %v188 = vrot.slane %v187, 4
    %v189 = vadd.f32 %v187, %v188
    %v190 = vrot.slane %v189, 2
    %v191 = vadd.f32 %v189, %v190
    %v192 = vrot.slane %v191, 1
    %v193 = vadd.f32 %v191, %v192
    %s194 = vtos %v193
    %s195 = sadd.f32 %s140, %s194
    %vm196 = vcmp.ge.s32.totalorder %v23, 96
    %vm197 = vcmp.lt.s32.totalorder %v23, 128
    %vm198 = vmand %vm196, %vm197
    %v199 = vsel %vm198, %v20, 0.0
    %v200 = vsel %vm33, %v199, 0.0
    %201 = vadd.xlane.f32.xlu0 %v200
    %v202 = vpop.xlane.xlu0 %201
    %v203 = vsel %vm198, %v21, 0.0
    %v204 = vsel %vm33, %v203, 0.0
    %205 = vadd.xlane.f32.xlu0 %v204
    %v206 = vpop.xlane.xlu0 %205
    %v207 = vrsqrt.pop %v202
    %v208 = vmul.f32 %v202, %v207
    %vm209 = vcmp.eq.f32.partialorder %v202, inf
    %v210 = vsel %vm209, %v202, %v208
    %vm211 = vcmp.eq.f32.partialorder %v202, 0.0
    %v212 = vand.u32 %v202, 2147483648
    %v213 = vsel %vm211, %v212, %v210
    %v214 = vrsqrt.pop %v206
    %v215 = vmul.f32 %v206, %v214
    %vm216 = vcmp.eq.f32.partialorder %v206, inf
    %v217 = vsel %vm216, %v206, %v215
    %vm218 = vcmp.eq.f32.partialorder %v206, 0.0
    %v219 = vand.u32 %v206, 2147483648
    %v220 = vsel %vm218, %v219, %v217
    %v221 = vsub.f32 %v213, %v220
    %v222 = vmax.f32 %v221, 0.0
    %v223 = vand.u32 2147483647, %v221
    %v224 = vsub.f32 0.0, %v223
    %v225 = vmul.f32 %v224, 1.442695
    %v226 = vpow.pop %v225
    %v227 = vadd.f32 %v226, 1.0
    %v228 = vlog2.pop %v227
    %v229 = vmul.f32 %v228, 0.6931472
    %v230 = vmul.f32 -0.5, %v226
    %v231 = vadd.f32 %v230, 1.0
    %v232 = vmul.f32 %v231, %v226
    %v233 = vand.u32 2147483647, %v226
    %vm234 = vcmp.lt.f32.partialorder %v233, 0.0004427343
    %v235 = vsel %vm234, %v232, %v229
    %v236 = vadd.f32 %v222, %v235
    %v237 = vadd.s32 %v71, 3
    %vm238 = vcmp.lt.s32.totalorder %v237, 8
    %v239 = vsel %vm238, %v236, 0.0
    %v240 = vsel %vm74, %v239, 0.0
    %241 = vadd.xlane.f32.xlu0 %v240
    %v242 = vpop.xlane.xlu0 %241
    %v243 = vrot.slane %v242, 4
    %v244 = vadd.f32 %v242, %v243
    %v245 = vrot.slane %v244, 2
    %v246 = vadd.f32 %v244, %v245
    %v247 = vrot.slane %v246, 1
    %v248 = vadd.f32 %v246, %v247
    %s249 = vtos %v248
    %s250 = sadd.f32 %s195, %s249
    %s251 = scalar_lea.smem [#allocation2], 0
    %252 = sst [smem:[%s251]] %s250
    // Predicated region
    $region14: #{_triplet_loss_impl.1} parent=1 // pred_check
      _
    $region15: #{_triplet_loss_impl.1} parent=1 // pred_check_branch
      %254 = sbr.rel (0) target = $region17
    $region16: #{_triplet_loss_impl.1} parent=1 // pred_region
      %s256 = ssub.s32 16, 16
      %257 = vsyncadd [#allocation3], %s256
      %260 = dma.smem_to_hbm [#allocation2], 16, %s3, [#allocation3]
    $region17: #{_triplet_loss_impl.1} parent=1 // pred_fallthru
      _
    // Predicated region
    $region18: #{_triplet_loss_impl.1} parent=1 // pred_check
      _
    $region19: #{_triplet_loss_impl.1} parent=1 // pred_check_branch
      %262 = sbr.rel (0) target = $region21
    $region20: #{_triplet_loss_impl.1} parent=1 // pred_region
      %263 = dma.done [#allocation3], 16
    $region21: #{_triplet_loss_impl.1} parent=1 // pred_fallthru
      _
    %264 = sfence
    %265 = vsyncpa [#allocation3], 1

</llo_original>
